<compile_context>
chip_gen: v7x
topology: tpu7x:2x2x1
jax: 0.10.0
libtpu: 0.0.40
codegen_flags: <defaults>
</compile_context>

<pallas_src>
import jax
import jax.numpy as jnp
from jax.experimental import pallas as pl
from jax.experimental.pallas import tpu as pltpu

IN_DIM = 4        # CartPole state dim
HIDDEN = 128      # affine1 width
OUT_LANES = 8     # packed output width: lane 0 = p(a0), 1 = p(a1), 2 = value, 3..7 = 0


def policy_kernel(x_ref, w1_ref, b1_ref, wh_ref, bh_ref, out_ref):
    """Fused Policy forward for one batch tile.

    x_ref  : [TB, 4]      input states
    w1_ref : [4, 128]     affine1 weight (in, out)
    b1_ref : [1, 128]     affine1 bias
    wh_ref : [128, 8]     packed heads weight (col0 = +logit diff, col1 = -logit diff,
                          col2 = value, cols 3..7 zero)
    bh_ref : [1, 8]       packed heads bias (same lane layout)
    out_ref: [TB, 8]      packed output (lanes 0/1 = probs, lane 2 = value)
    """
    x = x_ref[...]                                   # [TB, 4]
    w1 = w1_ref[...]                                 # [4, 128]

    # affine1 on the VPU: K=4 contraction as 4 FMAs (skips an MXU pass and keeps
    # the input DMA at 16 B/row).  On v6e/v7x this could be put on the idle MXU
    # with a zero-padded [TB,8]@[8,128] jnp.dot if the VALU becomes the binding slot.
    h = x[:, 0:1] * w1[0:1, :]
    h = h + x[:, 1:2] * w1[1:2, :]
    h = h + x[:, 2:3] * w1[2:3, :]
    h = h + x[:, 3:4] * w1[3:4, :]
    h = jnp.maximum(h + b1_ref[...], 0.0)            # [TB, 128]

    # Fused heads: one MXU pass, narrow packed N=8.
    heads = jnp.dot(h, wh_ref[...], preferred_element_type=jnp.float32)
    heads = heads + bh_ref[...]                      # [TB, 8]

    # 2-class softmax == sigmoid of the logit difference (exact):
    #   p0 = sigmoid(l0 - l1), p1 = sigmoid(l1 - l0) = 1 - p0.
    # Lanes 0/1 hold +d and -d, so a single element-wise sigmoid covers both
    # probabilities with no cross-lane reductions.  exp -> EUP; the divide is
    # replaced by the EUP approximate reciprocal (frees the VALU).
    sig = pl.reciprocal(1.0 + jnp.exp(-heads), approx=True)

    lane = jax.lax.broadcasted_iota(jnp.int32, heads.shape, 1)
    out_ref[...] = jnp.where(lane < 2, sig, heads)   # lanes 0/1 probs, lane 2 value


def pack_params(params):
    """One-time (init / param-update time) packing of the three Linear layers
    into the kernel's lane layout.  Hoisted out of the per-call path."""
    w1, b1, wa, ba, wv, bv = params
    d_w = wa[:, 0:1] - wa[:, 1:2]                                    # [128, 1]
    w_heads = jnp.concatenate(
        [d_w, -d_w, wv, jnp.zeros((HIDDEN, OUT_LANES - 3), jnp.float32)], axis=1)
    d_b = ba[:, 0:1] - ba[:, 1:2]                                    # [1, 1]
    b_heads = jnp.concatenate(
        [d_b, -d_b, bv, jnp.zeros((1, OUT_LANES - 3), jnp.float32)], axis=1)
    return w1, b1, w_heads, b_heads


def _round_up(n, m):
    return ((n + m - 1) // m) * m


@jax.jit
def policy_forward(x, packed_params):
    """x: [B, 4] float32. Returns (action_prob [B, 2], state_values [B, 1])."""
    w1, b1, w_heads, b_heads = packed_params
    B = x.shape[0]

    # Tile selection: a single tile for small batches; for large batches cap the
    # tile at 1024 and force >= 2 grid steps so ("parallel",) can shard across
    # both v7x TensorCores (and megacore on v5e/v6e).
    B8 = max(8, _round_up(B, 8))
    if B8 <= 256:
        TB = B8
    else:
        TB = min(1024, _round_up(-(-B8 // 2), 8))
    B_pad = _round_up(B8, TB)

    # Skip the padding copy entirely when the batch is already tile-aligned.
    if B_pad == B:
        x_p = x
    else:
        x_p = jnp.zeros((B_pad, IN_DIM), jnp.float32).at[:B, :].set(x)

    weight_bytes = 4 * (IN_DIM * HIDDEN + HIDDEN + HIDDEN * OUT_LANES + OUT_LANES)
    cost = pl.CostEstimate(
        flops=2 * B_pad * HIDDEN * (IN_DIM + OUT_LANES),
        transcendentals=2 * B_pad * OUT_LANES,
        bytes_accessed=B_pad * 4 * (IN_DIM + OUT_LANES) + weight_bytes,
    )

    out = pl.pallas_call(
        policy_kernel,
        out_shape=jax.ShapeDtypeStruct((B_pad, OUT_LANES), jnp.float32),
        grid_spec=pltpu.PrefetchScalarGridSpec(
            num_scalar_prefetch=0,
            grid=(B_pad // TB,),
            in_specs=[
                pl.BlockSpec((TB, IN_DIM), lambda i: (i, 0)),          # x tile
                pl.BlockSpec((IN_DIM, HIDDEN), lambda i: (0, 0)),      # w1 (resident)
                pl.BlockSpec((1, HIDDEN), lambda i: (0, 0)),           # b1 (resident)
                pl.BlockSpec((HIDDEN, OUT_LANES), lambda i: (0, 0)),   # packed heads W
                pl.BlockSpec((1, OUT_LANES), lambda i: (0, 0)),        # packed heads b
            ],
            out_specs=pl.BlockSpec((TB, OUT_LANES), lambda i: (i, 0)),
        ),
        compiler_params=pltpu.CompilerParams(
            dimension_semantics=("parallel",)),
        cost_estimate=cost,
    )(x_p, w1, b1, w_heads, b_heads)

    probs = out[:B, 0:2]
    values = out[:B, 2:3]
    return probs, values


def init_params(key):
    """Deterministic PyTorch-style Linear init: U(-1/sqrt(fan_in), 1/sqrt(fan_in))."""
    def linear(key, fan_in, fan_out):
        kw, kb = jax.random.split(key)
        bound = 1.0 / jnp.sqrt(jnp.float32(fan_in))
        w = jax.random.uniform(kw, (fan_in, fan_out), jnp.float32, -bound, bound)
        b = jax.random.uniform(kb, (1, fan_out), jnp.float32, -bound, bound)
        return w, b

    k1, k2, k3 = jax.random.split(key, 3)
    w1, b1 = linear(k1, 4, 128)     # affine1
    wa, ba = linear(k2, 128, 2)     # action_head
    wv, bv = linear(k3, 128, 1)     # value_head
    return w1, b1, wa, ba, wv, bv


# TODO(synk): act()/update() (Categorical sampling, returns normalization, Adam
# step) are host-side RL training logic with no Pallas-forward equivalent; only
# the forward pass is implemented as a kernel.

if __name__ == "__main__":
    key = jax.random.PRNGKey(0)
    k_params, k_x = jax.random.split(key)

    params = init_params(k_params)
    packed = pack_params(params)    # packed once at init time, not per forward

    # Small batch of CartPole-like states: [batch=2, state_dim=4]
    x = jax.random.normal(k_x, (2, 4), jnp.float32)

    probs, values = policy_forward(x, packed)
    jax.block_until_ready((probs, values))

    # Reference in plain JAX (highest matmul precision for a fair f32 compare).
    w1, b1, wa, ba, wv, bv = params
    hp = jax.lax.Precision.HIGHEST
    h_ref = jnp.maximum(jnp.dot(x, w1, precision=hp) + b1, 0.0)
    probs_ref = jax.nn.softmax(jnp.dot(h_ref, wa, precision=hp) + ba, axis=-1)
    values_ref = jnp.dot(h_ref, wv, precision=hp) + bv

    assert probs.shape == (2, 2) and values.shape == (2, 1), "bad output shapes"
    # probs tolerance is relaxed slightly because the kernel uses the EUP
    # approximate reciprocal for the sigmoid denominator.
    assert jnp.allclose(probs, probs_ref, atol=5e-3, rtol=1e-3), "action_prob mismatch"
    assert jnp.allclose(values, values_ref, atol=1e-4), "state_values mismatch"
    assert jnp.allclose(jnp.sum(probs, axis=-1), 1.0, atol=5e-3), "softmax not normalized"

    print("KERNEL_OK")
</pallas_src>

<mosaic_0001>
module attributes {stable_mosaic.version = 11 : i64} {
  func.func @policy_kernel(%arg0: i32, %arg1: memref<8x4xf32, #tpu.memory_space<vmem>>, %arg2: memref<4x128xf32, #tpu.memory_space<vmem>>, %arg3: memref<1x128xf32, #tpu.memory_space<vmem>>, %arg4: memref<128x8xf32, #tpu.memory_space<vmem>>, %arg5: memref<1x8xf32, #tpu.memory_space<vmem>>, %arg6: memref<8x8xf32, #tpu.memory_space<vmem>>) attributes {dimension_semantics = [#tpu.dimension_semantics<parallel>], iteration_bounds = array<i64: 1>, scalar_prefetch = 0 : i64, scratch_operands = 0 : i64, tpu.core_type = #tpu.core_type<tc>, window_params = [{transform_indices = @transform_0, window_bounds = array<i64: 8, 4>}, {pipeline_mode = #tpu.pipeline_mode<synchronous>, transform_indices = @transform_1, window_bounds = array<i64: 4, 128>}, {pipeline_mode = #tpu.pipeline_mode<synchronous>, transform_indices = @transform_2, window_bounds = array<i64: 1, 128>}, {pipeline_mode = #tpu.pipeline_mode<synchronous>, transform_indices = @transform_3, window_bounds = array<i64: 128, 8>}, {pipeline_mode = #tpu.pipeline_mode<synchronous>, transform_indices = @transform_4, window_bounds = array<i64: 1, 8>}, {transform_indices = @transform_5, window_bounds = array<i64: 8, 8>}]} {
    %c0 = arith.constant 0 : index
    %c0_0 = arith.constant 0 : index
    %0 = vector.load %arg1[%c0, %c0_0] : memref<8x4xf32, #tpu.memory_space<vmem>>, vector<8x4xf32>
    %c0_1 = arith.constant 0 : index
    %c0_2 = arith.constant 0 : index
    %1 = vector.load %arg2[%c0_1, %c0_2] : memref<4x128xf32, #tpu.memory_space<vmem>>, vector<4x128xf32>
    %2 = vector.extract_strided_slice %0 {offsets = [0, 0], sizes = [8, 1], strides = [1, 1]} : vector<8x4xf32> to vector<8x1xf32>
    %3 = vector.extract_strided_slice %1 {offsets = [0, 0], sizes = [1, 128], strides = [1, 1]} : vector<4x128xf32> to vector<1x128xf32>
    %4 = vector.broadcast %2 : vector<8x1xf32> to vector<8x128xf32>
    %5 = vector.broadcast %3 : vector<1x128xf32> to vector<8x128xf32>
    %6 = arith.mulf %4, %5 : vector<8x128xf32>
    %7 = vector.extract_strided_slice %0 {offsets = [0, 1], sizes = [8, 1], strides = [1, 1]} : vector<8x4xf32> to vector<8x1xf32>
    %8 = vector.extract_strided_slice %1 {offsets = [1, 0], sizes = [1, 128], strides = [1, 1]} : vector<4x128xf32> to vector<1x128xf32>
    %9 = vector.broadcast %7 : vector<8x1xf32> to vector<8x128xf32>
    %10 = vector.broadcast %8 : vector<1x128xf32> to vector<8x128xf32>
    %11 = arith.mulf %9, %10 : vector<8x128xf32>
    %12 = arith.addf %6, %11 : vector<8x128xf32>
    %13 = vector.extract_strided_slice %0 {offsets = [0, 2], sizes = [8, 1], strides = [1, 1]} : vector<8x4xf32> to vector<8x1xf32>
    %14 = vector.extract_strided_slice %1 {offsets = [2, 0], sizes = [1, 128], strides = [1, 1]} : vector<4x128xf32> to vector<1x128xf32>
    %15 = vector.broadcast %13 : vector<8x1xf32> to vector<8x128xf32>
    %16 = vector.broadcast %14 : vector<1x128xf32> to vector<8x128xf32>
    %17 = arith.mulf %15, %16 : vector<8x128xf32>
    %18 = arith.addf %12, %17 : vector<8x128xf32>
    %19 = vector.extract_strided_slice %0 {offsets = [0, 3], sizes = [8, 1], strides = [1, 1]} : vector<8x4xf32> to vector<8x1xf32>
    %20 = vector.extract_strided_slice %1 {offsets = [3, 0], sizes = [1, 128], strides = [1, 1]} : vector<4x128xf32> to vector<1x128xf32>
    %21 = vector.broadcast %19 : vector<8x1xf32> to vector<8x128xf32>
    %22 = vector.broadcast %20 : vector<1x128xf32> to vector<8x128xf32>
    %23 = arith.mulf %21, %22 : vector<8x128xf32>
    %24 = arith.addf %18, %23 : vector<8x128xf32>
    %c0_3 = arith.constant 0 : index
    %c0_4 = arith.constant 0 : index
    %25 = vector.load %arg3[%c0_3, %c0_4] : memref<1x128xf32, #tpu.memory_space<vmem>>, vector<1x128xf32>
    %26 = vector.broadcast %25 : vector<1x128xf32> to vector<8x128xf32>
    %27 = arith.addf %24, %26 : vector<8x128xf32>
    %cst = arith.constant 0.000000e+00 : f32
    %28 = vector.broadcast %cst : f32 to vector<8x128xf32>
    %29 = arith.maximumf %27, %28 : vector<8x128xf32>
    %c0_5 = arith.constant 0 : index
    %c0_6 = arith.constant 0 : index
    %30 = vector.load %arg4[%c0_5, %c0_6] : memref<128x8xf32, #tpu.memory_space<vmem>>, vector<128x8xf32>
    %cst_7 = arith.constant dense<0.000000e+00> : vector<8x8xf32>
    %31 = tpu.matmul %29, %30, %cst_7 {dimension_numbers = #tpu.dot_dimension_numbers<[1], [0], [0], [1], [0, 0, 1, 1], [], []>} : vector<8x128xf32>, vector<128x8xf32>, vector<8x8xf32> -> vector<8x8xf32>
    %c0_8 = arith.constant 0 : index
    %c0_9 = arith.constant 0 : index
    %32 = vector.load %arg5[%c0_8, %c0_9] : memref<1x8xf32, #tpu.memory_space<vmem>>, vector<1x8xf32>
    %33 = vector.broadcast %32 : vector<1x8xf32> to vector<8x8xf32>
    %34 = arith.addf %31, %33 : vector<8x8xf32>
    %cst_10 = arith.constant 0.000000e+00 : f32
    %35 = vector.broadcast %cst_10 : f32 to vector<8x8xf32>
    %36 = arith.subf %35, %34 : vector<8x8xf32>
    %37 = math.exp %36 : vector<8x8xf32>
    %cst_11 = arith.constant 1.000000e+00 : f32
    %38 = vector.broadcast %cst_11 : f32 to vector<8x8xf32>
    %39 = arith.addf %38, %37 : vector<8x8xf32>
    %40 = tpu.reciprocal %39 {approx = true} : vector<8x8xf32> -> vector<8x8xf32>
    %41 = tpu.iota {dimensions = array<i32: 1>} : vector<8x8xi32>
    %c2_i32 = arith.constant 2 : i32
    %42 = vector.broadcast %c2_i32 : i32 to vector<8x8xi32>
    %43 = arith.cmpi slt, %41, %42 : vector<8x8xi32>
    %44 = arith.select %43, %40, %34 : vector<8x8xi1>, vector<8x8xf32>
    %c0_12 = arith.constant 0 : index
    %c0_13 = arith.constant 0 : index
    %45 = vector.load %arg6[%c0_12, %c0_13] : memref<8x8xf32, #tpu.memory_space<vmem>>, vector<8x8xf32>
    tpu.vector_store %arg6[%c0_12, %c0_13], %44 {strides = array<i32>} : memref<8x8xf32, #tpu.memory_space<vmem>>, vector<8x8xf32>,
    return
  }
  func.func @transform_0(%arg0: i32) -> (i32, i32) {
    %c0_i32 = arith.constant 0 : i32
    %c0_i32_0 = arith.constant 0 : i32
    return %arg0, %c0_i32 : i32, i32
  }
  func.func @transform_1(%arg0: i32) -> (i32, i32) {
    %c0_i32 = arith.constant 0 : i32
    %c0_i32_0 = arith.constant 0 : i32
    %c0_i32_1 = arith.constant 0 : i32
    return %c0_i32, %c0_i32_0 : i32, i32
  }
  func.func @transform_2(%arg0: i32) -> (i32, i32) {
    %c0_i32 = arith.constant 0 : i32
    %c0_i32_0 = arith.constant 0 : i32
    %c0_i32_1 = arith.constant 0 : i32
    return %c0_i32, %c0_i32_0 : i32, i32
  }
  func.func @transform_3(%arg0: i32) -> (i32, i32) {
    %c0_i32 = arith.constant 0 : i32
    %c0_i32_0 = arith.constant 0 : i32
    %c0_i32_1 = arith.constant 0 : i32
    return %c0_i32, %c0_i32_0 : i32, i32
  }
  func.func @transform_4(%arg0: i32) -> (i32, i32) {
    %c0_i32 = arith.constant 0 : i32
    %c0_i32_0 = arith.constant 0 : i32
    %c0_i32_1 = arith.constant 0 : i32
    return %c0_i32, %c0_i32_0 : i32, i32
  }
  func.func @transform_5(%arg0: i32) -> (i32, i32) {
    %c0_i32 = arith.constant 0 : i32
    %c0_i32_0 = arith.constant 0 : i32
    return %arg0, %c0_i32 : i32, i32
  }
}

</mosaic_0001>

<llo_original>
// kernel: policy_forward.1
$region0: #{policy_forward.1}
  #allocation0 [shape = 'u32[]', space=smem, size = 0x4, offset = 0x4, fixed_abs, tag = 'smem constant byte address 0x4 - core index']
  #allocation1 [shape = 'u32[144,128]{1,0:T(1,128)}', space=vmem, size = 0x12000, scoped, tag = 'internal scratch']
  %s0 = inlined_call_operand.vmem [shape: f32[8,4], index: 0, kind: input, shape index: {}]
  %s1 = inlined_call_operand.vmem [shape: f32[4,128], index: 1, kind: input, shape index: {}]
  %s2 = inlined_call_operand.vmem [shape: f32[1,128], index: 2, kind: input, shape index: {}]
  %s3 = inlined_call_operand.vmem [shape: f32[128,8], index: 3, kind: input, shape index: {}]
  %s4 = inlined_call_operand.vmem [shape: f32[1,8], index: 4, kind: input, shape index: {}]
  %s5 = inlined_call_operand.vmem [shape: f32[8,8], index: 5, kind: output, shape index: {}]
  %s6 = sld [smem:[#allocation0]]
  $region30: #{policy_forward.1} parent=0
    _
  %s8 = ssub.s32 1, %s6
  %s9 = scalar_select 0, %s8, %s6
  // Predicated region
  $region2: #{policy_forward.1} parent=0 // pred_check
    _
  $region3: #{policy_forward.1} parent=0 // pred_check_branch
    %11 = sbr.rel (0) target = $region5
  $region4: #{policy_forward.1} parent=0 // pred_region
    _
  $region5: #{policy_forward.1} parent=0 // pred_fallthru
    _
  // Predicated region
  $region6: #{policy_forward.1} parent=0 // pred_check
    _
  $region7: #{policy_forward.1} parent=0 // pred_check_branch
    %13 = sbr.rel (0) target = $region9
  $region8: #{policy_forward.1} parent=0 // pred_region
    _
  $region9: #{policy_forward.1} parent=0 // pred_fallthru
    _
  // Predicated region
  $region10: #{policy_forward.1} parent=0 // pred_check
    _
  $region11: #{policy_forward.1} parent=0 // pred_check_branch
    %15 = sbr.rel (0) target = $region13
  $region12: #{policy_forward.1} parent=0 // pred_region
    _
  $region13: #{policy_forward.1} parent=0 // pred_fallthru
    _
  // Predicated region
  $region14: #{policy_forward.1} parent=0 // pred_check
    _
  $region15: #{policy_forward.1} parent=0 // pred_check_branch
    %17 = sbr.rel (0) target = $region17
  $region16: #{policy_forward.1} parent=0 // pred_region
    _
  $region17: #{policy_forward.1} parent=0 // pred_fallthru
    _
  // Predicated region
  $region18: #{policy_forward.1} parent=0 // pred_check
    _
  $region19: #{policy_forward.1} parent=0 // pred_check_branch
    %19 = sbr.rel (0) target = $region21
  $region20: #{policy_forward.1} parent=0 // pred_region
    _
  $region21: #{policy_forward.1} parent=0 // pred_fallthru
    _
  %v20 = vld [vmem:[%s0] sm:$0xff]
  %v21 = vld [vmem:[%s1] sm:$0xf]
  %23 = vset.pattern.permute.xlu0 0
  %24 = vperm.xlu0 %23, %v20
  %v25 = vpop.permute.xlu0 %24
  %v27 = vlaneseq
  %v28 = vshrl.u32 %v27, 7
  %v29 = vsub.s32 0, %v28
  %v30 = vrot.slane %v21, %v29
  %v31 = vmul.f32 %v25, %v30
  %32 = vset.pattern.permute.xlu0 1
  %33 = vperm.xlu0 %32, %v20
  %v34 = vpop.permute.xlu0 %33
  %v36 = vlaneseq
  %v37 = vshrl.u32 %v36, 7
  %v38 = vsub.s32 1, %v37
  %v39 = vrot.slane %v21, %v38
  %v40 = vmul.f32 %v34, %v39
  %v41 = vadd.f32 %v31, %v40
  %42 = vset.pattern.permute.xlu0 2
  %43 = vperm.xlu0 %42, %v20
  %v44 = vpop.permute.xlu0 %43
  %v46 = vlaneseq
  %v47 = vshrl.u32 %v46, 7
  %v48 = vsub.s32 2, %v47
  %v49 = vrot.slane %v21, %v48
  %v50 = vmul.f32 %v44, %v49
  %v51 = vadd.f32 %v41, %v50
  %52 = vset.pattern.permute.xlu0 3
  %53 = vperm.xlu0 %52, %v20
  %v54 = vpop.permute.xlu0 %53
  %v56 = vlaneseq
  %v57 = vshrl.u32 %v56, 7
  %v58 = vsub.s32 3, %v57
  %v59 = vrot.slane %v21, %v58
  %v60 = vmul.f32 %v54, %v59
  %v61 = vadd.f32 %v51, %v60
  %v62 = vld [vmem:[%s2] sm:$0x1]
  %v64 = vlaneseq
  %v65 = vshrl.u32 %v64, 7
  %v66 = vsub.s32 0, %v65
  %v67 = vrot.slane %v62, %v66
  %v69 = vadd.f32 %v61, %v67
  %v70 = vmax.f32 %v69, 0.0
  %v71 = vld [vmem:[%s3] sm:$0xff]
  %v72 = vld [vmem:[%s3 + $0x8] sm:$0xff]
  %v73 = vld [vmem:[%s3 + $0x10] sm:$0xff]
  %v74 = vld [vmem:[%s3 + $0x18] sm:$0xff]
  %v75 = vld [vmem:[%s3 + $0x20] sm:$0xff]
  %v76 = vld [vmem:[%s3 + $0x28] sm:$0xff]
  %v77 = vld [vmem:[%s3 + $0x30] sm:$0xff]
  %v78 = vld [vmem:[%s3 + $0x38] sm:$0xff]
  %v79 = vld [vmem:[%s3 + $0x40] sm:$0xff]
  %v80 = vld [vmem:[%s3 + $0x48] sm:$0xff]
  %v81 = vld [vmem:[%s3 + $0x50] sm:$0xff]
  %v82 = vld [vmem:[%s3 + $0x58] sm:$0xff]
  %v83 = vld [vmem:[%s3 + $0x60] sm:$0xff]
  %v84 = vld [vmem:[%s3 + $0x68] sm:$0xff]
  %v85 = vld [vmem:[%s3 + $0x70] sm:$0xff]
  %v86 = vld [vmem:[%s3 + $0x78] sm:$0xff]
  %v87 = vld [vmem:[%s4] sm:$0x1]
  %v89 = vlaneseq
  %v90 = vshrl.u32 %v89, 7
  %v91 = vsub.s32 0, %v90
  %v92 = vrot.slane %v87, %v91
  %94 = vmatprep.subr.mxu0 0.0
  %95 = vmatpush1.msra.mxu0 %v71
  %96 = vmatprep.subr.mxu0 0.0
  %97 = vmatpush1.msra.mxu0 %v72
  %98 = vmatprep.subr.mxu0 0.0
  %99 = vmatpush1.msra.mxu0 %v73
  %100 = vmatprep.subr.mxu0 0.0
  %101 = vmatpush1.msra.mxu0 %v74
  %102 = vmatprep.subr.mxu0 0.0
  %103 = vmatpush1.msra.mxu0 %v75
  %104 = vmatprep.subr.mxu0 0.0
  %105 = vmatpush1.msra.mxu0 %v76
  %106 = vmatprep.subr.mxu0 0.0
  %107 = vmatpush1.msra.mxu0 %v77
  %108 = vmatprep.subr.mxu0 0.0
  %109 = vmatpush1.msra.mxu0 %v78
  %110 = vmatprep.subr.mxu0 0.0
  %111 = vmatpush1.msra.mxu0 %v79
  %112 = vmatprep.subr.mxu0 0.0
  %113 = vmatpush1.msra.mxu0 %v80
  %114 = vmatprep.subr.mxu0 0.0
  %115 = vmatpush1.msra.mxu0 %v81
  %116 = vmatprep.subr.mxu0 0.0
  %117 = vmatpush1.msra.mxu0 %v82
  %118 = vmatprep.subr.mxu0 0.0
  %119 = vmatpush1.msra.mxu0 %v83
  %120 = vmatprep.subr.mxu0 0.0
  %121 = vmatpush1.msra.mxu0 %v84
  %122 = vmatprep.subr.mxu0 0.0
  %123 = vmatpush1.msra.mxu0 %v85
  %124 = vmatprep.subr.mxu0 0.0
  %125 = vmatpush1.msra.mxu0 %v86
  %126 = vmatprep.subr.mxu0 0.0
  %127 = vmatpush1.msra.mxu0 0.0
  %128 = vmatprep.subr.mxu0 0.0
  %129 = vmatpush1.msra.mxu0 0.0
  %130 = vmatprep.subr.mxu0 0.0
  %131 = vmatpush1.msra.mxu0 0.0
  %132 = vmatprep.subr.mxu0 0.0
  %133 = vmatpush1.msra.mxu0 0.0
  %134 = vmatprep.subr.mxu0 0.0
  %135 = vmatpush1.msra.mxu0 0.0
  %136 = vmatprep.subr.mxu0 0.0
  %137 = vmatpush1.msra.mxu0 0.0
  %138 = vmatprep.subr.mxu0 0.0
  %139 = vmatpush1.msra.mxu0 0.0
  %140 = vmatprep.subr.mxu0 0.0
  %141 = vmatpush1.msra.mxu0 0.0
  %142 = vmatprep.subr.mxu0 0.0
  %143 = vmatpush1.msra.mxu0 0.0
  %144 = vmatprep.subr.mxu0 0.0
  %145 = vmatpush1.msra.mxu0 0.0
  %146 = vmatprep.subr.mxu0 0.0
  %147 = vmatpush1.msra.mxu0 0.0
  %148 = vmatprep.subr.mxu0 0.0
  %149 = vmatpush1.msra.mxu0 0.0
  %150 = vmatprep.subr.mxu0 0.0
  %151 = vmatpush1.msra.mxu0 0.0
  %152 = vmatprep.subr.mxu0 0.0
  %153 = vmatpush1.msra.mxu0 0.0
  %154 = vmatprep.subr.mxu0 0.0
  %155 = vmatpush1.msra.mxu0 0.0
  %156 = vmatprep.subr.mxu0 0.0
  %157 = vmatpush1.msra.mxu0 0.0
  %158 = vmatprep.mubr.f32.mxu0 0.0
  %159 = vmatmul.mubr.f32.gmra.mrb[0].mxu0 %v70
  %v160 = vpop.f32.mrb[0].mxu0
  %v161 = vadd.f32 %v92, %v160
  %v162 = vpop.f32.mrb[0].mxu0
  %163 = vdwg.mxu0
  %v164 = vsub.f32 0.0, %v161
  %v165 = vmul.f32 %v164, 1.442695
  %v166 = vpow.pop %v165
  %v167 = vadd.f32 %v166, 1.0
  %v168 = vrcp.pop %v167
  %v169 = vlaneseq
  %v170 = vand.u32 %v169, 127
  %vm171 = vcmp.lt.s32.totalorder %v170, 2
  %v172 = vsel %vm171, %v168, %v161
  %vm173 = vcmask 64512
  %174 = vst.msk [vmem:[%s5] sm:$0xff] %vm173, %v172
  // Predicated region
  $region22: #{policy_forward.1} parent=0 // pred_check
    _
  $region23: #{policy_forward.1} parent=0 // pred_check_branch
    %176 = sbr.rel (0) target = $region25
  $region24: #{policy_forward.1} parent=0 // pred_region
    _
  $region25: #{policy_forward.1} parent=0 // pred_fallthru
    _
  // Predicated region
  $region26: #{policy_forward.1} parent=0 // pred_check
    _
  $region27: #{policy_forward.1} parent=0 // pred_check_branch
    %178 = sbr.rel (0) target = $region29
  $region28: #{policy_forward.1} parent=0 // pred_region
    _
  $region29: #{policy_forward.1} parent=0 // pred_fallthru
    _

</llo_original>
